<compile_context>
chip_gen: v5e
topology: v5e:2x2
jax: 0.10.0
libtpu: 0.0.40
codegen_flags: <defaults>
</compile_context>

<pallas_src>
import jax
import jax.numpy as jnp
from jax.experimental import pallas as pl
from jax.experimental.pallas import tpu as pltpu

LANE = 128   # vreg lane width
SUB = 8      # vreg sublane count (f32)
NCORES = 2   # split the reduction in two partials (dual-TC v7x; harmless elsewhere)


def _bce_sum_kernel(p_ref, t_ref, out_ref, acc_ref):
    """One (TR, 128) tile: accumulate clamped-BCE partial sum into acc_ref."""
    step = pl.program_id(1)

    @pl.when(step == 0)
    def _init():
        acc_ref[...] = jnp.zeros_like(acc_ref)

    p = p_ref[...].astype(jnp.float32)
    t = t_ref[...].astype(jnp.float32)

    # PyTorch clamps each log term at -100 to avoid -inf.
    log_p = jnp.maximum(jnp.log(p), -100.0)
    log_1mp = jnp.maximum(jnp.log(1.0 - p), -100.0)
    # -(t*log_p + (1-t)*log_1mp) == -(t*(log_p - log_1mp) + log_1mp)  (one fewer mul)
    loss = -(t * (log_p - log_1mp) + log_1mp)

    # Fold the tile's sublane groups onto the (8, 128) accumulator (VPU adds only;
    # no cross-lane XLU reduce per step).
    acc_ref[...] += loss.reshape(-1, SUB, LANE).sum(axis=0)

    @pl.when(step == pl.num_programs(1) - 1)
    def _finalize():
        out_ref[...] = acc_ref[...].reshape(out_ref.shape)


def _ceil_to(v, m):
    return ((v + m - 1) // m) * m


def ae_loss(recon_x, x, *, tile_rows=4096):
    """Pallas equivalent of AE_loss.forward(recon_x, x)."""
    n, d = recon_x.shape
    if d != 784:
        raise ValueError("AE_loss hardcodes a 784-wide flattened view")
    if x.size != n * d:
        raise ValueError("x must carry exactly N*784 elements to match x.view(-1, 784)")
    if tile_rows % SUB != 0:
        raise ValueError("tile_rows must be a multiple of 8")

    # Glue: x.view(-1, 784) pairing, then flatten both operands to 1D.
    p_flat = recon_x.reshape(-1)
    t_flat = x.reshape(-1, 784).reshape(-1)

    total = n * d
    # Lane-dense tiling: rows of 128 elements, split across NCORES partials.
    rows_per_core = _ceil_to(pl.cdiv(total, NCORES * LANE), SUB)
    tr = min(tile_rows, rows_per_core)
    steps = pl.cdiv(rows_per_core, tr)
    rows_per_core = steps * tr
    total_rows = NCORES * rows_per_core
    pad = total_rows * LANE - total

    # Zero-loss padding: p = t = 1  ->  -(1*log(1) + 0*clamp(log(0))) == 0.
    p_flat = jnp.pad(p_flat, (0, pad), constant_values=1)
    t_flat = jnp.pad(t_flat, (0, pad), constant_values=1)
    p2 = p_flat.reshape(total_rows, LANE)
    t2 = t_flat.reshape(total_rows, LANE)

    partials = pl.pallas_call(
        _bce_sum_kernel,
        out_shape=jax.ShapeDtypeStruct((NCORES, SUB, LANE), jnp.float32),
        grid_spec=pltpu.PrefetchScalarGridSpec(
            num_scalar_prefetch=0,
            grid=(NCORES, steps),
            in_specs=[
                pl.BlockSpec((tr, LANE), lambda c, i: (c * steps + i, 0)),
                pl.BlockSpec((tr, LANE), lambda c, i: (c * steps + i, 0)),
            ],
            out_specs=pl.BlockSpec((1, SUB, LANE), lambda c, i: (c, 0, 0)),
            scratch_shapes=[pltpu.VMEM((SUB, LANE), jnp.float32)],
        ),
        compiler_params=pltpu.CompilerParams(
            dimension_semantics=("parallel", "arbitrary")),
    )(p2, t2)

    # Tiny (2*8*128-element) final reduce in XLA glue.
    return jnp.sum(partials)


if __name__ == "__main__":
    key = jax.random.PRNGKey(0)
    k1, k2 = jax.random.split(key)

    N = 2
    # x: MNIST-like NCHW images in [0, 1]; 1*28*28 == 784 as the forward implies.
    x = jax.random.uniform(k1, (N, 1, 28, 28), dtype=jnp.float32)
    # recon_x: decoder output already squashed to (0, 1) (sigmoid of logits).
    recon_x = jax.nn.sigmoid(jax.random.normal(k2, (N, 784), dtype=jnp.float32))

    loss = ae_loss(recon_x, x)
    jax.block_until_ready(loss)

    # Sanity check against a pure-JAX reference of the same (clamped) formula.
    p = recon_x
    t = x.reshape(-1, 784)
    ref = jnp.sum(-(t * jnp.maximum(jnp.log(p), -100.0)
                    + (1.0 - t) * jnp.maximum(jnp.log(1.0 - p), -100.0)))
    assert jnp.allclose(loss, ref, rtol=1e-5, atol=1e-3), (loss, ref)

    print("KERNEL_OK")
</pallas_src>

<mosaic_0001>
module attributes {stable_mosaic.version = 11 : i64} {
  func.func @_bce_sum_kernel(%arg0: i32, %arg1: i32, %arg2: memref<8x128xf32, #tpu.memory_space<vmem>>, %arg3: memref<8x128xf32, #tpu.memory_space<vmem>>, %arg4: memref<1x8x128xf32, #tpu.memory_space<vmem>>, %arg5: memref<8x128xf32, #tpu.memory_space<vmem>>) attributes {dimension_semantics = [#tpu.dimension_semantics<parallel>, #tpu.dimension_semantics<arbitrary>], iteration_bounds = array<i64: 2, 1>, scalar_prefetch = 0 : i64, scratch_operands = 1 : i64, tpu.core_type = #tpu.core_type<tc>, window_params = [{transform_indices = @transform_0, window_bounds = array<i64: 8, 128>}, {transform_indices = @transform_1, window_bounds = array<i64: 8, 128>}, {transform_indices = @transform_2, window_bounds = array<i64: 1, 8, 128>}]} {
    %c0_i32 = arith.constant 0 : i32
    %0 = arith.cmpi eq, %arg1, %c0_i32 : i32
    %1 = arith.extui %0 : i1 to i32
    %c0_i32_0 = arith.constant 0 : i32
    %2 = arith.cmpi ne, %1, %c0_i32_0 : i32
    scf.if %2 {
      %cst_14 = arith.constant 0.000000e+00 : f32
      %26 = vector.broadcast %cst_14 : f32 to vector<8x128xf32>
      %c0_15 = arith.constant 0 : index
      %c0_16 = arith.constant 0 : index
      %27 = vector.load %arg5[%c0_15, %c0_16] : memref<8x128xf32, #tpu.memory_space<vmem>>, vector<8x128xf32>
      tpu.vector_store %arg5[%c0_15, %c0_16], %26 {strides = array<i32>} : memref<8x128xf32, #tpu.memory_space<vmem>>, vector<8x128xf32>,
    } else {
    }
    %c0 = arith.constant 0 : index
    %c0_1 = arith.constant 0 : index
    %3 = vector.load %arg2[%c0, %c0_1] : memref<8x128xf32, #tpu.memory_space<vmem>>, vector<8x128xf32>
    %c0_2 = arith.constant 0 : index
    %c0_3 = arith.constant 0 : index
    %4 = vector.load %arg3[%c0_2, %c0_3] : memref<8x128xf32, #tpu.memory_space<vmem>>, vector<8x128xf32>
    %5 = math.log %3 : vector<8x128xf32>
    %cst = arith.constant -1.000000e+02 : f32
    %6 = vector.broadcast %cst : f32 to vector<8x128xf32>
    %7 = arith.maximumf %5, %6 : vector<8x128xf32>
    %cst_4 = arith.constant 1.000000e+00 : f32
    %8 = vector.broadcast %cst_4 : f32 to vector<8x128xf32>
    %9 = arith.subf %8, %3 : vector<8x128xf32>
    %10 = math.log %9 : vector<8x128xf32>
    %cst_5 = arith.constant -1.000000e+02 : f32
    %11 = vector.broadcast %cst_5 : f32 to vector<8x128xf32>
    %12 = arith.maximumf %10, %11 : vector<8x128xf32>
    %13 = arith.subf %7, %12 : vector<8x128xf32>
    %14 = arith.mulf %4, %13 : vector<8x128xf32>
    %15 = arith.addf %14, %12 : vector<8x128xf32>
    %cst_6 = arith.constant 0.000000e+00 : f32
    %16 = vector.broadcast %cst_6 : f32 to vector<8x128xf32>
    %17 = arith.subf %16, %15 : vector<8x128xf32>
    %c0_7 = arith.constant 0 : index
    %c0_8 = arith.constant 0 : index
    %18 = vector.load %arg5[%c0_7, %c0_8] : memref<8x128xf32, #tpu.memory_space<vmem>>, vector<8x128xf32>
    %19 = vector.shape_cast %17 : vector<8x128xf32> to vector<1x8x128xf32>
    %cst_9 = arith.constant dense<0.000000e+00> : vector<8x128xf32>
    %20 = vector.multi_reduction <add>, %19, %cst_9 [0] : vector<1x8x128xf32> to vector<8x128xf32>
    %21 = arith.addf %18, %20 : vector<8x128xf32>
    %c0_10 = arith.constant 0 : index
    %c0_11 = arith.constant 0 : index
    %22 = vector.load %arg5[%c0_10, %c0_11] : memref<8x128xf32, #tpu.memory_space<vmem>>, vector<8x128xf32>
    tpu.vector_store %arg5[%c0_10, %c0_11], %21 {strides = array<i32>} : memref<8x128xf32, #tpu.memory_space<vmem>>, vector<8x128xf32>,
    %c0_i32_12 = arith.constant 0 : i32
    %23 = arith.cmpi eq, %arg1, %c0_i32_12 : i32
    %24 = arith.extui %23 : i1 to i32
    %c0_i32_13 = arith.constant 0 : i32
    %25 = arith.cmpi ne, %24, %c0_i32_13 : i32
    scf.if %25 {
      %c0_14 = arith.constant 0 : index
      %c0_15 = arith.constant 0 : index
      %26 = vector.load %arg5[%c0_14, %c0_15] : memref<8x128xf32, #tpu.memory_space<vmem>>, vector<8x128xf32>
      %27 = vector.shape_cast %26 : vector<8x128xf32> to vector<1x8x128xf32>
      %c0_16 = arith.constant 0 : index
      %c0_17 = arith.constant 0 : index
      %c0_18 = arith.constant 0 : index
      %28 = vector.load %arg4[%c0_16, %c0_17, %c0_18] : memref<1x8x128xf32, #tpu.memory_space<vmem>>, vector<1x8x128xf32>
      tpu.vector_store %arg4[%c0_16, %c0_17, %c0_18], %27 {strides = array<i32>} : memref<1x8x128xf32, #tpu.memory_space<vmem>>, vector<1x8x128xf32>,
    } else {
    }
    return
  }
  func.func @transform_0(%arg0: i32, %arg1: i32) -> (i32, i32) {
    %c1_i32 = arith.constant 1 : i32
    %0 = arith.muli %arg0, %c1_i32 : i32
    %1 = arith.addi %0, %arg1 : i32
    %c0_i32 = arith.constant 0 : i32
    %c0_i32_0 = arith.constant 0 : i32
    return %1, %c0_i32 : i32, i32
  }
  func.func @transform_1(%arg0: i32, %arg1: i32) -> (i32, i32) {
    %c1_i32 = arith.constant 1 : i32
    %0 = arith.muli %arg0, %c1_i32 : i32
    %1 = arith.addi %0, %arg1 : i32
    %c0_i32 = arith.constant 0 : i32
    %c0_i32_0 = arith.constant 0 : i32
    return %1, %c0_i32 : i32, i32
  }
  func.func @transform_2(%arg0: i32, %arg1: i32) -> (i32, i32, i32) {
    %c0_i32 = arith.constant 0 : i32
    %c0_i32_0 = arith.constant 0 : i32
    %c0_i32_1 = arith.constant 0 : i32
    return %arg0, %c0_i32, %c0_i32_0 : i32, i32, i32
  }
}

</mosaic_0001>

<llo_original>
// kernel: tpu_custom_call.1
$region0: #{tpu_custom_call.1}
  #allocation0 [shape = 'u32[]', space=smem, size = 0x4, offset = 0x4, fixed_abs, tag = 'smem constant byte address 0x4 - core index']
  #allocation1 [shape = 'u32[72,128]{1,0:T(1,128)}', space=vmem, size = 0x9000, scoped, tag = 'internal scratch']
  #allocation2 [shape = 'f32[8,128]{1,0:T(8,128)}', space=vmem, size = 0x1000, scoped, tag = 'scratch operand']
  %s0 = inlined_call_operand.hbm [shape: f32[16,128], index: 0, kind: input, shape index: {}]
  %s1 = inlined_call_operand.hbm [shape: f32[16,128], index: 1, kind: input, shape index: {}]
  %s2 = inlined_call_operand.hbm [shape: f32[2,8,128], index: 2, kind: output, shape index: {}]
  %s3 = sld [smem:[#allocation0]]
  $region57: #{tpu_custom_call.1} parent=0
    _
  %s5 = ssub.s32 1, %s3
  %s6 = scalar_select 0, %s5, %s3
  $region1: #{tpu_custom_call.1} parent=0
    #allocation3 [shape = 'u8[8192]{0}', space=vmem, size = 0x2000, scoped, tag = 'input window, operand 0']
    #allocation4 [shape = 's32[2]{0}', space=sflag, size = 0x8, scoped, tag = 'scoped memory for tpu_custom_call.1']
    #allocation5 [shape = 's32[2]{0}', space=sflag, size = 0x8, scoped, tag = 'scoped memory for tpu_custom_call.1']
    #allocation6 [shape = 'u8[8192]{0}', space=vmem, size = 0x2000, scoped, tag = 'input window, operand 1']
    #allocation7 [shape = 's32[2]{0}', space=sflag, size = 0x8, scoped, tag = 'scoped memory for tpu_custom_call.1']
    #allocation8 [shape = 'u8[8192]{0}', space=vmem, size = 0x2000, scoped, tag = 'output window, operand 0']
    %7 = vsyncpa [#allocation4], 0
    %s8 = scalar_lea.sflag [#allocation4], 1
    %9 = vsyncpa %s8, 0
    %10 = vsyncpa [#allocation7], 0
    %s11 = scalar_lea.sflag [#allocation7], 1
    %12 = vsyncpa %s11, 0
    %13 = vsyncpa [#allocation5], 0
    %s14 = scalar_lea.sflag [#allocation5], 1
    %15 = vsyncpa %s14, 0
    loop: start=0, step=1, limit=4
    $region2: #{tpu_custom_call.1} parent=1 // loop_pre_header
      _
    $region3: #{tpu_custom_call.1} parent=1 // loop_header
      %s17 = sphi 0, %s21
      %p18 = scmp.ge.s32.totalorder %s17, 4
      %s24 = sphi 0, %s36
      %s25 = sphi 0, %s32
      %s26 = sphi 0, %s24
      %s27 = sphi 0, %s25
      %s28 = sphi 0, %s26
      %s29 = sphi 0, %s27
      %s41 = sphi 0, %s43
      %s44 = sphi 0, %s41
      %s45 = sphi 0, %s44
      %s61 = sphi 0, %s45
      %s69 = sphi 0, %s71
      %s72 = sphi 0, %s69
      %s73 = sphi 0, %s72
      %s89 = sphi 0, %s73
      %s95 = sphi 0, %s97
      %s98 = sphi 0, %s95
      %s99 = sphi 0, %s98
      %s115 = sphi 0, %s99
    $region4: #{tpu_custom_call.1} parent=1 // loop_header_branch
      %20 = sbr.rel (%p18) target = $region8
    $region5: #{tpu_custom_call.1} parent=1 // loop_body
      %s22 = ssub.s32 %s17, 1
      %s23 = ssub.s32 %s17, 2
      %s30 = sadd.s32 1, %s25
      %p31 = scmp.ge.s32.totalorder %s30, 1
      %s32 = scalar_select %p31, 0, %s30
      %s33 = sadd.s32 1, %s24
      %s34 = scalar_select %p31, %s33, %s24
      %p35 = scmp.ge.s32.totalorder %s34, 2
      %s36 = scalar_select %p35, 0, %s34
      %s37 = sadd.s32 %s24, %s25
      %s38 = sadd.s32 %s36, %s32
      %s39 = ssub.s32 %s37, %s38
      %p40 = scmp.eq.s32.totalorder %s39, 0
      %s42 = sadd.s32 %s41, 1
      %s43 = scalar_select %p40, %s41, %s42
      %p46 = pneg %p40
      %p47 = scmp.eq.s32.totalorder %s17, 1
      %p48 = por %p46, %p47
      %p49 = scmp.ne.s32.totalorder %s41, %s44
      %p50 = scmp.eq.s32.totalorder %s17, 0
      %p51 = por %p49, %p50
      %p52 = scmp.ne.s32.totalorder %s41, %s44
      %p53 = scmp.eq.s32.totalorder %s22, 1
      %p54 = por %p52, %p53
      %p55 = scmp.ne.s32.totalorder %s44, %s45
      %p56 = scmp.eq.s32.totalorder %s22, 0
      %p57 = por %p55, %p56
      %p58 = scmp.ne.s32.totalorder %s44, %s45
      %p59 = scmp.eq.s32.totalorder %s23, 1
      %p60 = por %p58, %p59
      %p62 = scmp.ne.s32.totalorder %s45, %s61
      %p63 = scmp.eq.s32.totalorder %s23, 0
      %p64 = por %p62, %p63
      %s65 = sadd.s32 %s24, %s25
      %s66 = sadd.s32 %s36, %s32
      %s67 = ssub.s32 %s65, %s66
      %p68 = scmp.eq.s32.totalorder %s67, 0
      %s70 = sadd.s32 %s69, 1
      %s71 = scalar_select %p68, %s69, %s70
      %p74 = pneg %p68
      %p75 = scmp.eq.s32.totalorder %s17, 1
      %p76 = por %p74, %p75
      %p77 = scmp.ne.s32.totalorder %s69, %s72
      %p78 = scmp.eq.s32.totalorder %s17, 0
      %p79 = por %p77, %p78
      %p80 = scmp.ne.s32.totalorder %s69, %s72
      %p81 = scmp.eq.s32.totalorder %s22, 1
      %p82 = por %p80, %p81
      %p83 = scmp.ne.s32.totalorder %s72, %s73
      %p84 = scmp.eq.s32.totalorder %s22, 0
      %p85 = por %p83, %p84
      %p86 = scmp.ne.s32.totalorder %s72, %s73
      %p87 = scmp.eq.s32.totalorder %s23, 1
      %p88 = por %p86, %p87
      %p90 = scmp.ne.s32.totalorder %s73, %s89
      %p91 = scmp.eq.s32.totalorder %s23, 0
      %p92 = por %p90, %p91
      %s93 = ssub.s32 %s24, %s36
      %p94 = scmp.eq.s32.totalorder %s93, 0
      %s96 = sadd.s32 %s95, 1
      %s97 = scalar_select %p94, %s95, %s96
      %p100 = pneg %p94
      %p101 = scmp.eq.s32.totalorder %s17, 1
      %p102 = por %p100, %p101
      %p103 = scmp.ne.s32.totalorder %s95, %s98
      %p104 = scmp.eq.s32.totalorder %s17, 0
      %p105 = por %p103, %p104
      %p106 = scmp.ne.s32.totalorder %s95, %s98
      %p107 = scmp.eq.s32.totalorder %s22, 1
      %p108 = por %p106, %p107
      %p109 = scmp.ne.s32.totalorder %s98, %s99
      %p110 = scmp.eq.s32.totalorder %s22, 0
      %p111 = por %p109, %p110
      %p112 = scmp.ne.s32.totalorder %s98, %s99
      %p113 = scmp.eq.s32.totalorder %s23, 1
      %p114 = por %p112, %p113
      %p116 = scmp.ne.s32.totalorder %s99, %s115
      %p117 = scmp.eq.s32.totalorder %s23, 0
      %p118 = por %p116, %p117
      %p119 = scmp.le.s32.totalorder 1, %s17
      %p120 = scmp.lt.s32.totalorder %s17, 3
      %p121 = pnand %p119, %p120
      %p122 = pneg %p121
      // Predicated region
      $region9: #{tpu_custom_call.1} parent=5 // pred_check
        _
      $region10: #{tpu_custom_call.1} parent=5 // pred_check_branch
        %124 = sbr.rel (%p121) target = $region12
      $region11: #{tpu_custom_call.1} parent=5 // pred_region
        %s125 = ssub.s32 %s17, 1
      $region12: #{tpu_custom_call.1} parent=5 // pred_fallthru
        _
      %p126 = scmp.lt.s32.totalorder %s17, 2
      // Predicated region
      $region13: #{tpu_custom_call.1} parent=5 // pred_check
        %p127 = pneg %p126
      $region14: #{tpu_custom_call.1} parent=5 // pred_check_branch
        %129 = sbr.rel (%p127) target = $region16
      $region15: #{tpu_custom_call.1} parent=5 // pred_region
        // Predicated region
        $region17: #{tpu_custom_call.1} parent=15 // pred_check
          %p130 = pneg %p51
        $region18: #{tpu_custom_call.1} parent=15 // pred_check_branch
          %132 = sbr.rel (%p130) target = $region20
        $region19: #{tpu_custom_call.1} parent=15 // pred_region
          %s133 = sand.u32 %s41, 1
          %s134 = scalar_lea.sflag [#allocation4], %s133
          %s135 = sand.u32 %s41, 1
          %s136 = smul.addr %s135, 8
          %s137 = scalar_lea.vmem [#allocation3], %s136
          %s138 = sadd.s32 %s24, %s25
          %140 = vsyncadd %s134, 0
          %s141 = smul.addr %s138, 8
          %s142 = scalar_lea.hbm %s0, %s141
          %s144 = sshll.u32 %s142, 4
          %s145 = int_to_ptr.hbm [resolvable:$true] %s144
          %s146 = sshll.u32 %s137, 4
          %s147 = int_to_ptr.vmem [resolvable:$true] %s146
          %149 = dma.hbm_to_vmem [thread:$0]  %s145, 128, %s147, %s134
        $region20: #{tpu_custom_call.1} parent=15 // pred_fallthru
          _
        // Predicated region
        $region21: #{tpu_custom_call.1} parent=15 // pred_check
          %p150 = pneg %p79
        $region22: #{tpu_custom_call.1} parent=15 // pred_check_branch
          %152 = sbr.rel (%p150) target = $region24
        $region23: #{tpu_custom_call.1} parent=15 // pred_region
          %s153 = sand.u32 %s69, 1
          %s154 = scalar_lea.sflag [#allocation7], %s153
          %s155 = sand.u32 %s69, 1
          %s156 = smul.addr %s155, 8
          %s157 = scalar_lea.vmem [#allocation6], %s156
          %s158 = sadd.s32 %s24, %s25
          %160 = vsyncadd %s154, 0
          %s161 = smul.addr %s158, 8
          %s162 = scalar_lea.hbm %s1, %s161
          %s164 = sshll.u32 %s162, 4
          %s165 = int_to_ptr.hbm [resolvable:$true] %s164
          %s166 = sshll.u32 %s157, 4
          %s167 = int_to_ptr.vmem [resolvable:$true] %s166
          %169 = dma.hbm_to_vmem [thread:$0]  %s165, 128, %s167, %s154
        $region24: #{tpu_custom_call.1} parent=15 // pred_fallthru
          _
      $region16: #{tpu_custom_call.1} parent=5 // pred_fallthru
        _
      %p170 = scmp.le.s32.totalorder 1, %s17
      %p171 = scmp.lt.s32.totalorder %s17, 3
      %p172 = pnand %p170, %p171
      %p173 = pneg %p172
      // Predicated region
      $region25: #{tpu_custom_call.1} parent=5 // pred_check
        _
      $region26: #{tpu_custom_call.1} parent=5 // pred_check_branch
        %175 = sbr.rel (%p172) target = $region28
      $region27: #{tpu_custom_call.1} parent=5 // pred_region
        %s176 = ssub.s32 %s17, 1
        %s177 = sand.u32 %s44, 1
        %s178 = scalar_lea.sflag [#allocation4], %s177
        %s179 = sand.u32 %s44, 1
        %s180 = smul.addr %s179, 8
        %s181 = scalar_lea.vmem [#allocation3], %s180
        // Predicated region
        $region29: #{tpu_custom_call.1} parent=27 // pred_check
          %p182 = pneg %p57
        $region30: #{tpu_custom_call.1} parent=27 // pred_check_branch
          %184 = sbr.rel (%p182) target = $region32
        $region31: #{tpu_custom_call.1} parent=27 // pred_region
          %186 = dma.done %s178, 128
        $region32: #{tpu_custom_call.1} parent=27 // pred_fallthru
          _
        %s187 = sand.u32 %s72, 1
        %s188 = scalar_lea.sflag [#allocation7], %s187
        %s189 = sand.u32 %s72, 1
        %s190 = smul.addr %s189, 8
        %s191 = scalar_lea.vmem [#allocation6], %s190
        // Predicated region
        $region33: #{tpu_custom_call.1} parent=27 // pred_check
          %p192 = pneg %p85
        $region34: #{tpu_custom_call.1} parent=27 // pred_check_branch
          %194 = sbr.rel (%p192) target = $region36
        $region35: #{tpu_custom_call.1} parent=27 // pred_region
          %196 = dma.done %s188, 128
        $region36: #{tpu_custom_call.1} parent=27 // pred_fallthru
          _
        %s197 = sand.u32 %s44, 1
        %s198 = scalar_lea.sflag [#allocation4], %s197
        %s199 = sand.u32 %s44, 1
        %s200 = smul.addr %s199, 8
        %s201 = scalar_lea.vmem [#allocation3], %s200
        %p202 = pneg %p57
        %p203 = pneg %p54
        %s204 = sand.u32 %s72, 1
        %s205 = scalar_lea.sflag [#allocation7], %s204
        %s206 = sand.u32 %s72, 1
        %s207 = smul.addr %s206, 8
        %s208 = scalar_lea.vmem [#allocation6], %s207
        %p209 = pneg %p85
        %p210 = pneg %p82
        %p211 = pneg %p111
        %p212 = pneg %p108
        %s213 = sand.u32 %s98, 1
        %s214 = scalar_lea.sflag [#allocation5], %s213
        %s215 = sand.u32 %s98, 1
        %s216 = smul.addr %s215, 8
        %s217 = scalar_lea.vmem [#allocation8], %s216
        %s218 = sadd.s32 %s26, %s27
        %s219 = sadd.s32 %s26, %s27
        %p220 = scmp.eq.s32.totalorder %s27, 0
        // Predicated region
        $region37: #{tpu_custom_call.1} parent=27 // pred_check
          %p221 = pneg %p220
        $region38: #{tpu_custom_call.1} parent=27 // pred_check_branch
          %223 = sbr.rel (%p221) target = $region40
        $region39: #{tpu_custom_call.1} parent=27 // pred_region
          %224 = vst [vmem:[#allocation2] sm:$0xff] 0.0
        $region40: #{tpu_custom_call.1} parent=27 // pred_fallthru
          _
        %v225 = vld [vmem:[%s181] sm:$0xff]
        %v226 = vld [vmem:[%s191] sm:$0xff]
        %v227 = vlog2.pop %v225
        %v228 = vmul.f32 %v227, 0.6931472
        %v229 = vmax.f32 %v228, -100.0
        %v230 = vsub.f32 1.0, %v225
        %v231 = vlog2.pop %v230
        %v232 = vmul.f32 %v231, 0.6931472
        %v233 = vmax.f32 %v232, -100.0
        %v234 = vsub.f32 %v229, %v233
        %v235 = vmul.f32 %v226, %v234
        %v236 = vadd.f32 %v235, %v233
        %v237 = vsub.f32 0.0, %v236
        %v238 = vld [vmem:[#allocation2] sm:$0xff]
        %v239 = vadd.f32 %v237, 0.0
        %v240 = vadd.f32 %v238, %v239
        %241 = vst [vmem:[#allocation2] sm:$0xff] %v240
        // Predicated region
        $region41: #{tpu_custom_call.1} parent=27 // pred_check
          %p242 = pneg %p220
        $region42: #{tpu_custom_call.1} parent=27 // pred_check_branch
          %244 = sbr.rel (%p242) target = $region44
        $region43: #{tpu_custom_call.1} parent=27 // pred_region
          %v245 = vld [vmem:[#allocation2] sm:$0xff]
          %246 = vst [vmem:[%s217] sm:$0xff] %v245
        $region44: #{tpu_custom_call.1} parent=27 // pred_fallthru
          _
        %s247 = sand.u32 %s98, 1
        %s248 = scalar_lea.sflag [#allocation5], %s247
        %s249 = sand.u32 %s98, 1
        %s250 = smul.addr %s249, 8
        %s251 = scalar_lea.vmem [#allocation8], %s250
        // Predicated region
        $region45: #{tpu_custom_call.1} parent=27 // pred_check
          %p252 = pneg %p108
        $region46: #{tpu_custom_call.1} parent=27 // pred_check_branch
          %254 = sbr.rel (%p252) target = $region48
        $region47: #{tpu_custom_call.1} parent=27 // pred_region
          %256 = vsyncadd %s248, 0
          %s257 = smul.addr %s26, 8
          %s258 = scalar_lea.hbm %s2, %s257
          %s260 = sshll.u32 %s251, 4
          %s261 = int_to_ptr.vmem [resolvable:$true] %s260
          %s262 = sshll.u32 %s258, 4
          %s263 = int_to_ptr.hbm [resolvable:$true] %s262
          %265 = dma.vmem_to_hbm [thread:$0]  %s261, 128, %s263, %s248
        $region48: #{tpu_custom_call.1} parent=27 // pred_fallthru
          _
      $region28: #{tpu_custom_call.1} parent=5 // pred_fallthru
        _
      %p266 = scmp.le.s32.totalorder 2, %s17
      // Predicated region
      $region49: #{tpu_custom_call.1} parent=5 // pred_check
        %p267 = pneg %p266
      $region50: #{tpu_custom_call.1} parent=5 // pred_check_branch
        %269 = sbr.rel (%p267) target = $region52
      $region51: #{tpu_custom_call.1} parent=5 // pred_region
        %s270 = ssub.s32 %s17, 2
        // Predicated region
        $region53: #{tpu_custom_call.1} parent=51 // pred_check
          %p271 = pneg %p114
        $region54: #{tpu_custom_call.1} parent=51 // pred_check_branch
          %273 = sbr.rel (%p271) target = $region56
        $region55: #{tpu_custom_call.1} parent=51 // pred_region
          %s274 = sand.u32 %s99, 1
          %s275 = scalar_lea.sflag [#allocation5], %s274
          %s276 = sand.u32 %s99, 1
          %s277 = smul.addr %s276, 8
          %s278 = scalar_lea.vmem [#allocation8], %s277
          %280 = dma.done %s275, 128
        $region56: #{tpu_custom_call.1} parent=51 // pred_fallthru
          _
      $region52: #{tpu_custom_call.1} parent=5 // pred_fallthru
        _
    $region6: #{tpu_custom_call.1} parent=1 // loop_footer
      %s21 = sadd.s32 1, %s17
    $region7: #{tpu_custom_call.1} parent=1 // loop_footer_branch
      %16 = sbr.rel target = $region3
    $region8: #{tpu_custom_call.1} parent=1 // loop_exit
      _
    %281 = vsyncpa [#allocation4], 1
    %s282 = scalar_lea.sflag [#allocation4], 1
    %283 = vsyncpa %s282, 1
    %284 = vsyncpa [#allocation7], 1
    %s285 = scalar_lea.sflag [#allocation7], 1
    %286 = vsyncpa %s285, 1
    %287 = vsyncpa [#allocation5], 1
    %s288 = scalar_lea.sflag [#allocation5], 1
    %289 = vsyncpa %s288, 1

</llo_original>
